<compile_context>
chip_gen: v7x
topology: tpu7x:2x2x1
jax: 0.10.0
libtpu: 0.0.40
codegen_flags: <defaults>
</compile_context>

<pallas_src>
import functools

import jax
import jax.numpy as jnp
import numpy as np
from jax.experimental import pallas as pl
from jax.experimental.pallas import tpu as pltpu


# ----------------------------------------------------------------------------
# Argument parsing / validation (mirrors the PyTorch module)
# ----------------------------------------------------------------------------
_VALID_MODES = ("constant", "reflect", "replicate", "circular")


def _parse_padding_size(padding_size):
    if isinstance(padding_size, int):
        return [padding_size] * 4
    if isinstance(padding_size, (tuple, list)):
        if len(padding_size) == 2:
            return [padding_size[0]] * 2 + [padding_size[1]] * 2
        if len(padding_size) == 4:
            return list(padding_size)
    raise NotImplementedError()


def _parse_padding_mode(padding_mode):
    if padding_mode is None:
        return ("reflect", "circular")
    if isinstance(padding_mode, str):
        assert padding_mode in _VALID_MODES
        return (padding_mode, padding_mode)
    if isinstance(padding_mode, (tuple, list)):
        assert len(padding_mode) == 2 and all(p in _VALID_MODES for p in padding_mode)
        return tuple(padding_mode)
    raise NotImplementedError()


def _check_pad(dim, lo, hi, mode, axis_name):
    if lo < 0 or hi < 0:
        raise NotImplementedError(f"negative {axis_name} padding is not supported")
    if mode == "reflect" and max(lo, hi) > dim - 1:
        raise ValueError(
            f"reflect padding ({lo},{hi}) must be <= {axis_name} size - 1 ({dim - 1})")
    if mode == "circular" and max(lo, hi) > dim:
        raise ValueError(
            f"circular padding ({lo},{hi}) must be <= {axis_name} size ({dim})")
    if mode == "replicate" and max(lo, hi) > 0 and dim < 1:
        raise ValueError(f"replicate padding requires a non-empty {axis_name} axis")


# ----------------------------------------------------------------------------
# Pallas kernel: H-pad (sublane) then W-pad (lane), via direct sliced stores
# ----------------------------------------------------------------------------
def pad2d_kernel(x_ref, o_ref, *, h_pad, w_pad, h_mode, w_mode):
    # x_ref: (TB, H, W) ; o_ref: (TB, H + h_lo + h_hi, W + w_lo + w_hi)
    h_lo, h_hi = h_pad
    w_lo, w_hi = w_pad
    TB, H, W = x_ref.shape
    x = x_ref[...]

    def w_side(band, is_lo, size):
        # W-boundary columns of `band` (TB, R, W) for the given side/mode.
        if w_mode == "circular":
            return band[:, :, W - size:] if is_lo else band[:, :, :size]
        if w_mode == "reflect":
            sl = band[:, :, 1:1 + size] if is_lo else band[:, :, W - 1 - size:W - 1]
            return jax.lax.rev(sl, dimensions=(2,)) if size > 1 else sl
        if w_mode == "replicate":
            edge = band[:, :, 0:1] if is_lo else band[:, :, W - 1:W]
            return jnp.broadcast_to(edge, band.shape[:2] + (size,))
        # "constant" (F.pad default value = 0)
        return jnp.zeros(band.shape[:2] + (size,), band.dtype)

    def store_band(band, row0):
        # One bulk store of the band, plus thin W-boundary column stores.
        R = band.shape[1]
        o_ref[:, row0:row0 + R, w_lo:w_lo + W] = band
        if w_lo > 0:
            o_ref[:, row0:row0 + R, 0:w_lo] = w_side(band, True, w_lo)
        if w_hi > 0:
            o_ref[:, row0:row0 + R, w_lo + W:w_lo + W + w_hi] = w_side(band, False, w_hi)

    def h_halo(is_lo, size):
        # H-halo rows (already in output row order), from thin row slices of x.
        if h_mode == "circular":
            return x[:, H - size:, :] if is_lo else x[:, :size, :]
        if h_mode == "reflect":
            sl = x[:, 1:1 + size, :] if is_lo else x[:, H - 1 - size:H - 1, :]
            return jax.lax.rev(sl, dimensions=(1,)) if size > 1 else sl
        if h_mode == "replicate":
            edge = x[:, 0:1, :] if is_lo else x[:, H - 1:H, :]
            return jnp.broadcast_to(edge, (TB, size, W))
        return jnp.zeros((TB, size, W), x.dtype)

    store_band(x, h_lo)                               # interior rows (bulk)
    if h_lo > 0:
        store_band(h_halo(True, h_lo), 0)             # top H-halo rows (thin)
    if h_hi > 0:
        store_band(h_halo(False, h_hi), h_lo + H)     # bottom H-halo rows (thin)


# ----------------------------------------------------------------------------
# Per-generation VMEM budgets
# ----------------------------------------------------------------------------
def _pick_budgets():
    """(per-step in+out tile byte budget, vmem_limit_bytes, max vmem_limit)."""
    tile_budget, vmem_limit, vmem_max = 12 << 20, 32 << 20, 48 << 20  # safe on v7x
    try:
        info = pltpu.get_tpu_info()
        cap = int(getattr(info, "vmem_capacity_bytes", 0) or 0)
        if cap >= (96 << 20):        # v5e / v6e: 128 MiB physical VMEM
            tile_budget, vmem_limit, vmem_max = 24 << 20, 64 << 20, 100 << 20
    except Exception:
        pass
    return tile_budget, vmem_limit, vmem_max


# ----------------------------------------------------------------------------
# Wrapper
# ----------------------------------------------------------------------------
def padding_block_2d(x_nchw, padding_size=1, padding_mode=None):
    # padding_size -> [w_lo, w_hi, h_lo, h_hi]; padding_mode -> (w_mode, h_mode).
    # Forward applies mode[1] to H first, then mode[0] to W (see module code).
    w_lo, w_hi, h_lo, h_hi = _parse_padding_size(padding_size)
    w_mode, h_mode = _parse_padding_mode(padding_mode)

    N, C, H, W = x_nchw.shape
    _check_pad(H, h_lo, h_hi, h_mode, "H")
    _check_pad(W, w_lo, w_hi, w_mode, "W")
    Ho, Wo = H + h_lo + h_hi, W + w_lo + w_hi
    NC = N * C
    x = x_nchw.reshape(NC, H, W)                    # contiguous reshape: free
    itemsize = jnp.dtype(x.dtype).itemsize

    tile_budget, vmem_limit, vmem_max = _pick_budgets()
    bytes_per_plane = (H * W + Ho * Wo) * itemsize
    if bytes_per_plane > tile_budget:
        # Single plane is the minimum tile (see TODO at top): widen the limit.
        vmem_limit = max(vmem_limit, min(2 * bytes_per_plane + (4 << 20), vmem_max))

    # Planes per grid step: as large as the budget allows (long DMAs, few
    # 0.35 us/step overheads) but with >= 2 grid steps when NC > 1 so the
    # "parallel" plane axis can shard across v7x's two TensorCores.
    cap = max(1, tile_budget // bytes_per_plane)
    if NC > 1:
        cap = min(cap, pl.cdiv(NC, 2))
    tb = int(max(1, min(cap, NC)))
    grid = (pl.cdiv(NC, tb),)                       # ragged last block is masked

    kernel = functools.partial(
        pad2d_kernel,
        h_pad=(h_lo, h_hi), w_pad=(w_lo, w_hi), h_mode=h_mode, w_mode=w_mode)

    out = pl.pallas_call(
        kernel,
        out_shape=jax.ShapeDtypeStruct((NC, Ho, Wo), x.dtype),
        grid_spec=pltpu.PrefetchScalarGridSpec(
            num_scalar_prefetch=0,
            grid=grid,
            in_specs=[pl.BlockSpec((tb, H, W), lambda i: (i, 0, 0))],
            out_specs=pl.BlockSpec((tb, Ho, Wo), lambda i: (i, 0, 0)),
        ),
        compiler_params=pltpu.CompilerParams(
            dimension_semantics=("parallel",),       # shards across 2 TCs on v7x
            vmem_limit_bytes=int(vmem_limit),
        ),
        cost_estimate=pl.CostEstimate(
            flops=0, transcendentals=0,
            bytes_accessed=int(NC * bytes_per_plane)),
    )(x)

    return out.reshape(N, C, Ho, Wo)


class PaddingBlock2dPallas:
    """JAX/Pallas equivalent of PaddingBlock2d."""

    def __init__(self, padding_size, padding_mode=None):
        self.padding_size = _parse_padding_size(padding_size)
        self.padding_mode = _parse_padding_mode(padding_mode)

    def __call__(self, x_nchw):
        return padding_block_2d(x_nchw, self.padding_size, self.padding_mode)


# ----------------------------------------------------------------------------
def _reference(x, padding_size, padding_mode):
    w_lo, w_hi, h_lo, h_hi = _parse_padding_size(padding_size)
    w_mode, h_mode = _parse_padding_mode(padding_mode)
    np_mode = {"circular": "wrap", "reflect": "reflect",
               "replicate": "edge", "constant": "constant"}
    r = np.pad(np.asarray(x), ((0, 0), (0, 0), (h_lo, h_hi), (0, 0)),
               mode=np_mode[h_mode])
    r = np.pad(r, ((0, 0), (0, 0), (0, 0), (w_lo, w_hi)),
               mode=np_mode[w_mode])
    return r


if __name__ == "__main__":
    key = jax.random.PRNGKey(0)

    # Primary case: module defaults (reflect on W, circular on H).
    N, C, H, W = 2, 4, 16, 16
    x = jax.random.normal(key, (N, C, H, W), jnp.float32)
    block = PaddingBlock2dPallas(padding_size=1, padding_mode=None)
    y = jax.block_until_ready(jax.jit(block.__call__)(x))
    assert y.shape == (N, C, H + 2, W + 2), y.shape
    np.testing.assert_array_equal(np.asarray(y), _reference(x, 1, None))

    # Extra coverage: asymmetric pads, ragged last plane block, other modes.
    cases = [
        ((1, 3, 7, 5), (2, 1, 3, 2), ("replicate", "reflect")),
        ((2, 3, 8, 12), (2, 2), "circular"),
        ((1, 5, 9, 10), (3, 0, 0, 1), ("constant", "circular")),
    ]
    for shape, psize, pmode in cases:
        key, sub = jax.random.split(key)
        xi = jax.random.normal(sub, shape, jnp.float32)
        yi = jax.block_until_ready(padding_block_2d(xi, psize, pmode))
        np.testing.assert_array_equal(np.asarray(yi), _reference(xi, psize, pmode))

    print("KERNEL_OK")
</pallas_src>

<mosaic_0001>
module attributes {stable_mosaic.version = 11 : i64} {
  func.func @pad2d_kernel(%arg0: i32, %arg1: memref<4x16x16xf32, #tpu.memory_space<vmem>>, %arg2: memref<4x18x18xf32, #tpu.memory_space<vmem>>) attributes {dimension_semantics = [#tpu.dimension_semantics<parallel>], iteration_bounds = array<i64: 2>, scalar_prefetch = 0 : i64, scratch_operands = 0 : i64, tpu.core_type = #tpu.core_type<tc>, window_params = [{transform_indices = @transform_0, window_bounds = array<i64: 4, 16, 16>}, {transform_indices = @transform_1, window_bounds = array<i64: 4, 18, 18>}]} {
    %c0 = arith.constant 0 : index
    %c0_0 = arith.constant 0 : index
    %c0_1 = arith.constant 0 : index
    %0 = vector.load %arg1[%c0, %c0_0, %c0_1] : memref<4x16x16xf32, #tpu.memory_space<vmem>>, vector<4x16x16xf32>
    %c0_2 = arith.constant 0 : index
    %c1 = arith.constant 1 : index
    %c1_3 = arith.constant 1 : index
    %1 = vector.load %arg2[%c0_2, %c1, %c1_3] : memref<4x18x18xf32, #tpu.memory_space<vmem>>, vector<4x16x16xf32>
    tpu.vector_store %arg2[%c0_2, %c1, %c1_3], %0 {strides = array<i32>} : memref<4x18x18xf32, #tpu.memory_space<vmem>>, vector<4x16x16xf32>,
    %2 = vector.extract_strided_slice %0 {offsets = [0, 0, 1], sizes = [4, 16, 1], strides = [1, 1, 1]} : vector<4x16x16xf32> to vector<4x16x1xf32>
    %c0_4 = arith.constant 0 : index
    %c1_5 = arith.constant 1 : index
    %c0_6 = arith.constant 0 : index
    %3 = vector.load %arg2[%c0_4, %c1_5, %c0_6] : memref<4x18x18xf32, #tpu.memory_space<vmem>>, vector<4x16x1xf32>
    tpu.vector_store %arg2[%c0_4, %c1_5, %c0_6], %2 {strides = array<i32>} : memref<4x18x18xf32, #tpu.memory_space<vmem>>, vector<4x16x1xf32>,
    %4 = vector.extract_strided_slice %0 {offsets = [0, 0, 14], sizes = [4, 16, 1], strides = [1, 1, 1]} : vector<4x16x16xf32> to vector<4x16x1xf32>
    %c0_7 = arith.constant 0 : index
    %c1_8 = arith.constant 1 : index
    %c17 = arith.constant 17 : index
    %5 = vector.load %arg2[%c0_7, %c1_8, %c17] : memref<4x18x18xf32, #tpu.memory_space<vmem>>, vector<4x16x1xf32>
    tpu.vector_store %arg2[%c0_7, %c1_8, %c17], %4 {strides = array<i32>} : memref<4x18x18xf32, #tpu.memory_space<vmem>>, vector<4x16x1xf32>,
    %6 = vector.extract_strided_slice %0 {offsets = [0, 15, 0], sizes = [4, 1, 16], strides = [1, 1, 1]} : vector<4x16x16xf32> to vector<4x1x16xf32>
    %c0_9 = arith.constant 0 : index
    %c0_10 = arith.constant 0 : index
    %c1_11 = arith.constant 1 : index
    %7 = vector.load %arg2[%c0_9, %c0_10, %c1_11] : memref<4x18x18xf32, #tpu.memory_space<vmem>>, vector<4x1x16xf32>
    tpu.vector_store %arg2[%c0_9, %c0_10, %c1_11], %6 {strides = array<i32>} : memref<4x18x18xf32, #tpu.memory_space<vmem>>, vector<4x1x16xf32>,
    %8 = vector.extract_strided_slice %6 {offsets = [0, 0, 1], sizes = [4, 1, 1], strides = [1, 1, 1]} : vector<4x1x16xf32> to vector<4x1x1xf32>
    %c0_12 = arith.constant 0 : index
    %c0_13 = arith.constant 0 : index
    %c0_14 = arith.constant 0 : index
    %9 = vector.load %arg2[%c0_12, %c0_13, %c0_14] : memref<4x18x18xf32, #tpu.memory_space<vmem>>, vector<4x1x1xf32>
    tpu.vector_store %arg2[%c0_12, %c0_13, %c0_14], %8 {strides = array<i32>} : memref<4x18x18xf32, #tpu.memory_space<vmem>>, vector<4x1x1xf32>,
    %10 = vector.extract_strided_slice %6 {offsets = [0, 0, 14], sizes = [4, 1, 1], strides = [1, 1, 1]} : vector<4x1x16xf32> to vector<4x1x1xf32>
    %c0_15 = arith.constant 0 : index
    %c0_16 = arith.constant 0 : index
    %c17_17 = arith.constant 17 : index
    %11 = vector.load %arg2[%c0_15, %c0_16, %c17_17] : memref<4x18x18xf32, #tpu.memory_space<vmem>>, vector<4x1x1xf32>
    tpu.vector_store %arg2[%c0_15, %c0_16, %c17_17], %10 {strides = array<i32>} : memref<4x18x18xf32, #tpu.memory_space<vmem>>, vector<4x1x1xf32>,
    %12 = vector.extract_strided_slice %0 {offsets = [0, 0, 0], sizes = [4, 1, 16], strides = [1, 1, 1]} : vector<4x16x16xf32> to vector<4x1x16xf32>
    %c0_18 = arith.constant 0 : index
    %c17_19 = arith.constant 17 : index
    %c1_20 = arith.constant 1 : index
    %13 = vector.load %arg2[%c0_18, %c17_19, %c1_20] : memref<4x18x18xf32, #tpu.memory_space<vmem>>, vector<4x1x16xf32>
    tpu.vector_store %arg2[%c0_18, %c17_19, %c1_20], %12 {strides = array<i32>} : memref<4x18x18xf32, #tpu.memory_space<vmem>>, vector<4x1x16xf32>,
    %14 = vector.extract_strided_slice %12 {offsets = [0, 0, 1], sizes = [4, 1, 1], strides = [1, 1, 1]} : vector<4x1x16xf32> to vector<4x1x1xf32>
    %c0_21 = arith.constant 0 : index
    %c17_22 = arith.constant 17 : index
    %c0_23 = arith.constant 0 : index
    %15 = vector.load %arg2[%c0_21, %c17_22, %c0_23] : memref<4x18x18xf32, #tpu.memory_space<vmem>>, vector<4x1x1xf32>
    tpu.vector_store %arg2[%c0_21, %c17_22, %c0_23], %14 {strides = array<i32>} : memref<4x18x18xf32, #tpu.memory_space<vmem>>, vector<4x1x1xf32>,
    %16 = vector.extract_strided_slice %12 {offsets = [0, 0, 14], sizes = [4, 1, 1], strides = [1, 1, 1]} : vector<4x1x16xf32> to vector<4x1x1xf32>
    %c0_24 = arith.constant 0 : index
    %c17_25 = arith.constant 17 : index
    %c17_26 = arith.constant 17 : index
    %17 = vector.load %arg2[%c0_24, %c17_25, %c17_26] : memref<4x18x18xf32, #tpu.memory_space<vmem>>, vector<4x1x1xf32>
    tpu.vector_store %arg2[%c0_24, %c17_25, %c17_26], %16 {strides = array<i32>} : memref<4x18x18xf32, #tpu.memory_space<vmem>>, vector<4x1x1xf32>,
    return
  }
  func.func @transform_0(%arg0: i32) -> (i32, i32, i32) {
    %c0_i32 = arith.constant 0 : i32
    %c0_i32_0 = arith.constant 0 : i32
    %c0_i32_1 = arith.constant 0 : i32
    return %arg0, %c0_i32, %c0_i32_0 : i32, i32, i32
  }
  func.func @transform_1(%arg0: i32) -> (i32, i32, i32) {
    %c0_i32 = arith.constant 0 : i32
    %c0_i32_0 = arith.constant 0 : i32
    %c0_i32_1 = arith.constant 0 : i32
    return %arg0, %c0_i32, %c0_i32_0 : i32, i32, i32
  }
}

</mosaic_0001>

<llo_original>
// kernel: a_call__.1
$region0: #{a_call__.1}
  #allocation0 [shape = 'u32[]', space=smem, size = 0x4, offset = 0x4, fixed_abs, tag = 'smem constant byte address 0x4 - core index']
  #allocation1 [shape = 'u32[144,128]{1,0:T(1,128)}', space=vmem, size = 0x12000, scoped, tag = 'internal scratch']
  %s0 = inlined_call_operand.hbm [shape: f32[8,16,16], index: 0, kind: input, shape index: {}]
  %s1 = inlined_call_operand.vmem [shape: f32[8,18,18], index: 1, kind: output, shape index: {}]
  %s2 = sld [smem:[#allocation0]]
  $region41: #{a_call__.1} parent=0
    _
  %s4 = ssub.s32 1, %s2
  %s5 = scalar_select 0, %s4, %s2
  $region1: #{a_call__.1} parent=0
    #allocation2 [shape = 'u8[65536]{0}', space=vmem, size = 0x10000, scoped, tag = 'input window, operand 0']
    #allocation3 [shape = 's32[2]{0}', space=sflag, size = 0x8, scoped, tag = 'scoped memory for a_call__.1']
    %6 = vsyncpa [#allocation3], 0
    %s7 = scalar_lea.sflag [#allocation3], 1
    %8 = vsyncpa %s7, 0
    loop: start=0, step=1, limit=4
    $region2: #{a_call__.1} parent=1 // loop_pre_header
      _
    $region3: #{a_call__.1} parent=1 // loop_header
      %s10 = sphi 0, %s14
      %p11 = scmp.ge.s32.totalorder %s10, 4
      %s20 = sphi 0, %s22
      %s23 = sphi 0, %s20
      %s24 = sphi 0, %s23
      %s40 = sphi 0, %s24
      %s46 = sphi 0, %s48
      %s49 = sphi 0, %s46
      %s50 = sphi 0, %s49
      %s66 = sphi 0, %s50
    $region4: #{a_call__.1} parent=1 // loop_header_branch
      %13 = sbr.rel (%p11) target = $region8
    $region5: #{a_call__.1} parent=1 // loop_body
      %s15 = ssub.s32 %s10, 1
      %s16 = ssub.s32 %s10, 2
      %s17 = sadd.s32 %s10, 1
      %s18 = ssub.s32 %s10, %s17
      %p19 = scmp.eq.s32.totalorder %s18, 0
      %s21 = sadd.s32 %s20, 1
      %s22 = scalar_select %p19, %s20, %s21
      %p25 = pneg %p19
      %p26 = scmp.eq.s32.totalorder %s10, 1
      %p27 = por %p25, %p26
      %p28 = scmp.ne.s32.totalorder %s20, %s23
      %p29 = scmp.eq.s32.totalorder %s10, 0
      %p30 = por %p28, %p29
      %p31 = scmp.ne.s32.totalorder %s20, %s23
      %p32 = scmp.eq.s32.totalorder %s15, 1
      %p33 = por %p31, %p32
      %p34 = scmp.ne.s32.totalorder %s23, %s24
      %p35 = scmp.eq.s32.totalorder %s15, 0
      %p36 = por %p34, %p35
      %p37 = scmp.ne.s32.totalorder %s23, %s24
      %p38 = scmp.eq.s32.totalorder %s16, 1
      %p39 = por %p37, %p38
      %p41 = scmp.ne.s32.totalorder %s24, %s40
      %p42 = scmp.eq.s32.totalorder %s16, 0
      %p43 = por %p41, %p42
      %s44 = ssub.s32 %s10, %s17
      %p45 = scmp.eq.s32.totalorder %s44, 0
      %s47 = sadd.s32 %s46, 1
      %s48 = scalar_select %p45, %s46, %s47
      %p51 = pneg %p45
      %p52 = scmp.eq.s32.totalorder %s10, 1
      %p53 = por %p51, %p52
      %p54 = scmp.ne.s32.totalorder %s46, %s49
      %p55 = scmp.eq.s32.totalorder %s10, 0
      %p56 = por %p54, %p55
      %p57 = scmp.ne.s32.totalorder %s46, %s49
      %p58 = scmp.eq.s32.totalorder %s15, 1
      %p59 = por %p57, %p58
      %p60 = scmp.ne.s32.totalorder %s49, %s50
      %p61 = scmp.eq.s32.totalorder %s15, 0
      %p62 = por %p60, %p61
      %p63 = scmp.ne.s32.totalorder %s49, %s50
      %p64 = scmp.eq.s32.totalorder %s16, 1
      %p65 = por %p63, %p64
      %p67 = scmp.ne.s32.totalorder %s50, %s66
      %p68 = scmp.eq.s32.totalorder %s16, 0
      %p69 = por %p67, %p68
      %p70 = scmp.le.s32.totalorder 1, %s10
      %p71 = scmp.lt.s32.totalorder %s10, 3
      %p72 = pnand %p70, %p71
      %p73 = pneg %p72
      // Predicated region
      $region9: #{a_call__.1} parent=5 // pred_check
        _
      $region10: #{a_call__.1} parent=5 // pred_check_branch
        %75 = sbr.rel (%p72) target = $region12
      $region11: #{a_call__.1} parent=5 // pred_region
        %s76 = ssub.s32 %s10, 1
      $region12: #{a_call__.1} parent=5 // pred_fallthru
        _
      %p77 = scmp.lt.s32.totalorder %s10, 2
      // Predicated region
      $region13: #{a_call__.1} parent=5 // pred_check
        %p78 = pneg %p77
      $region14: #{a_call__.1} parent=5 // pred_check_branch
        %80 = sbr.rel (%p78) target = $region16
      $region15: #{a_call__.1} parent=5 // pred_region
        // Predicated region
        $region17: #{a_call__.1} parent=15 // pred_check
          %p81 = pneg %p30
        $region18: #{a_call__.1} parent=15 // pred_check_branch
          %83 = sbr.rel (%p81) target = $region20
        $region19: #{a_call__.1} parent=15 // pred_region
          %s84 = sand.u32 %s20, 1
          %s85 = scalar_lea.sflag [#allocation3], %s84
          %s86 = sand.u32 %s20, 1
          %s87 = smul.addr %s86, 64
          %s88 = scalar_lea.vmem [#allocation2], %s87
          %s89 = smul.u32 4, %s10
          %s91 = ssub.s32 1024, 1024
          %92 = vsyncadd %s85, %s91
          %s93 = smul.addr %s89, 2
          %s94 = smul.addr %s93, 128
          %s95 = scalar_lea.hbm %s0, %s94
          %s96 = sshll.u32 %s88, 4
          %s97 = int_to_ptr.vmem [resolvable:$true] %s96
          %102 = dma.hbm_to_vmem [thread:$0]  %s95, 1024, %s97, %s85, 128, 128, 8
        $region20: #{a_call__.1} parent=15 // pred_fallthru
          _
      $region16: #{a_call__.1} parent=5 // pred_fallthru
        _
      %p103 = scmp.le.s32.totalorder 1, %s10
      %p104 = scmp.lt.s32.totalorder %s10, 3
      %p105 = pnand %p103, %p104
      %p106 = pneg %p105
      // Predicated region
      $region21: #{a_call__.1} parent=5 // pred_check
        _
      $region22: #{a_call__.1} parent=5 // pred_check_branch
        %108 = sbr.rel (%p105) target = $region24
      $region23: #{a_call__.1} parent=5 // pred_region
        %s109 = ssub.s32 %s10, 1
        %s110 = sand.u32 %s23, 1
        %s111 = scalar_lea.sflag [#allocation3], %s110
        %s112 = sand.u32 %s23, 1
        %s113 = smul.addr %s112, 64
        %s114 = scalar_lea.vmem [#allocation2], %s113
        // Predicated region
        $region25: #{a_call__.1} parent=23 // pred_check
          %p115 = pneg %p36
        $region26: #{a_call__.1} parent=23 // pred_check_branch
          %117 = sbr.rel (%p115) target = $region28
        $region27: #{a_call__.1} parent=23 // pred_region
          %118 = dma.done %s111, 1024
        $region28: #{a_call__.1} parent=23 // pred_fallthru
          _
        %s119 = sand.u32 %s23, 1
        %s120 = scalar_lea.sflag [#allocation3], %s119
        %s121 = sand.u32 %s23, 1
        %s122 = smul.addr %s121, 64
        %s123 = scalar_lea.vmem [#allocation2], %s122
        %p124 = pneg %p36
        %p125 = pneg %p33
        %p126 = pneg %p62
        %p127 = pneg %p59
        %s128 = smul.u32 4, %s15
        %p129 = scmp.lt.s32.totalorder %s128, 7
        %s130 = scalar_select %p129, %s128, 7
        %s131 = smul.addr %s130, 3
        %s132 = smul.addr %s131, 8
        %s133 = scalar_lea.vmem %s1, %s132
        %s134 = smul.u32 4, %s15
        %s135 = smul.u32 4, %s15
        %p136 = scmp.lt.s32.totalorder %s135, 7
        %s137 = scalar_select %p136, %s135, 7
        %s138 = smul.addr %s137, 3
        %s139 = smul.addr %s138, 8
        %s140 = scalar_lea.vmem %s1, %s139
        %s141 = smul.u32 4, %s15
        %v142 = vld [vmem:[%s114] sm:$0xff]
        %v143 = vld [vmem:[%s114 + $0x8] sm:$0xff]
        %v144 = vld [vmem:[%s114 + $0x10] sm:$0xff]
        %v145 = vld [vmem:[%s114 + $0x18] sm:$0xff]
        %v146 = vld [vmem:[%s114 + $0x20] sm:$0xff]
        %v147 = vld [vmem:[%s114 + $0x28] sm:$0xff]
        %v148 = vld [vmem:[%s114 + $0x30] sm:$0xff]
        %v149 = vld [vmem:[%s114 + $0x38] sm:$0xff]
        %158 = vrot.lane.b32.xlu0 %v142, 1
        %v159 = vpop.permute.xlu0 %158
        %160 = vrot.lane.b32.xlu0 %v143, 1
        %v161 = vpop.permute.xlu0 %160
        %162 = vrot.lane.b32.xlu0 %v144, 1
        %v163 = vpop.permute.xlu0 %162
        %164 = vrot.lane.b32.xlu0 %v145, 1
        %v165 = vpop.permute.xlu0 %164
        %166 = vrot.lane.b32.xlu0 %v146, 1
        %v167 = vpop.permute.xlu0 %166
        %168 = vrot.lane.b32.xlu0 %v147, 1
        %v169 = vpop.permute.xlu0 %168
        %170 = vrot.lane.b32.xlu0 %v148, 1
        %v171 = vpop.permute.xlu0 %170
        %172 = vrot.lane.b32.xlu0 %v149, 1
        %v173 = vpop.permute.xlu0 %172
        %vm182 = vcmask 138248
        %183 = vst.msk [vmem:[%s140 + $0x1] sm:$0xff] %vm182, %v159
        %184 = vst.msk [vmem:[%s140 + $0x9] sm:$0xff] %vm182, %v161
        %185 = vst.msk [vmem:[%s140 + $0x19] sm:$0xff] %vm182, %v163
        %186 = vst.msk [vmem:[%s140 + $0x21] sm:$0xff] %vm182, %v165
        %187 = vst.msk [vmem:[%s140 + $0x31] sm:$0xff] %vm182, %v167
        %188 = vst.msk [vmem:[%s140 + $0x39] sm:$0xff] %vm182, %v169
        %189 = vst.msk [vmem:[%s140 + $0x49] sm:$0xff] %vm182, %v171
        %190 = vst.msk [vmem:[%s140 + $0x51] sm:$0xff] %vm182, %v173
        %191 = vrot.lane.b32.xlu0 %v142, 127
        %v192 = vpop.permute.xlu0 %191
        %193 = vrot.lane.b32.xlu0 %v143, 127
        %v194 = vpop.permute.xlu0 %193
        %195 = vrot.lane.b32.xlu0 %v144, 127
        %v196 = vpop.permute.xlu0 %195
        %197 = vrot.lane.b32.xlu0 %v145, 127
        %v198 = vpop.permute.xlu0 %197
        %199 = vrot.lane.b32.xlu0 %v146, 127
        %v200 = vpop.permute.xlu0 %199
        %201 = vrot.lane.b32.xlu0 %v147, 127
        %v202 = vpop.permute.xlu0 %201
        %203 = vrot.lane.b32.xlu0 %v148, 127
        %v204 = vpop.permute.xlu0 %203
        %205 = vrot.lane.b32.xlu0 %v149, 127
        %v206 = vpop.permute.xlu0 %205
        %vm215 = vcmask 7168
        %216 = vst.msk [vmem:[%s140 + $0x1] sm:$0xff] %vm215, %v192
        %217 = vst.msk [vmem:[%s140 + $0x9] sm:$0xff] %vm215, %v194
        %218 = vst.msk [vmem:[%s140 + $0x19] sm:$0xff] %vm215, %v196
        %219 = vst.msk [vmem:[%s140 + $0x21] sm:$0xff] %vm215, %v198
        %220 = vst.msk [vmem:[%s140 + $0x31] sm:$0xff] %vm215, %v200
        %221 = vst.msk [vmem:[%s140 + $0x39] sm:$0xff] %vm215, %v202
        %222 = vst.msk [vmem:[%s140 + $0x49] sm:$0xff] %vm215, %v204
        %223 = vst.msk [vmem:[%s140 + $0x51] sm:$0xff] %vm215, %v206
        %224 = vrot.lane.b32.xlu0 %v142, 3
        %v225 = vpop.permute.xlu0 %224
        %226 = vrot.lane.b32.xlu0 %v143, 3
        %v227 = vpop.permute.xlu0 %226
        %228 = vrot.lane.b32.xlu0 %v144, 3
        %v229 = vpop.permute.xlu0 %228
        %230 = vrot.lane.b32.xlu0 %v145, 3
        %v231 = vpop.permute.xlu0 %230
        %232 = vrot.lane.b32.xlu0 %v146, 3
        %v233 = vpop.permute.xlu0 %232
        %234 = vrot.lane.b32.xlu0 %v147, 3
        %v235 = vpop.permute.xlu0 %234
        %236 = vrot.lane.b32.xlu0 %v148, 3
        %v237 = vpop.permute.xlu0 %236
        %238 = vrot.lane.b32.xlu0 %v149, 3
        %v239 = vpop.permute.xlu0 %238
        %vm248 = vcmask 146568
        %249 = vst.msk [vmem:[%s140 + $0x1] sm:$0xff] %vm248, %v225
        %250 = vst.msk [vmem:[%s140 + $0x9] sm:$0xff] %vm248, %v227
        %251 = vst.msk [vmem:[%s140 + $0x19] sm:$0xff] %vm248, %v229
        %252 = vst.msk [vmem:[%s140 + $0x21] sm:$0xff] %vm248, %v231
        %253 = vst.msk [vmem:[%s140 + $0x31] sm:$0xff] %vm248, %v233
        %254 = vst.msk [vmem:[%s140 + $0x39] sm:$0xff] %vm248, %v235
        %255 = vst.msk [vmem:[%s140 + $0x49] sm:$0xff] %vm248, %v237
        %256 = vst.msk [vmem:[%s140 + $0x51] sm:$0xff] %vm248, %v239
        %vm257 = vcmask 138255
        %258 = vst.msk [vmem:[%s140 - $0x7] sm:$0x80] %vm257, %v161
        %259 = vst.msk [vmem:[%s140 + $0x11] sm:$0x80] %vm257, %v165
        %260 = vst.msk [vmem:[%s140 + $0x29] sm:$0x80] %vm257, %v169
        %261 = vst.msk [vmem:[%s140 + $0x41] sm:$0x80] %vm257, %v173
        %vm262 = vcmask 7175
        %263 = vst.msk [vmem:[%s140 - $0x7] sm:$0x80] %vm262, %v194
        %264 = vst.msk [vmem:[%s140 + $0x11] sm:$0x80] %vm262, %v198
        %265 = vst.msk [vmem:[%s140 + $0x29] sm:$0x80] %vm262, %v202
        %266 = vst.msk [vmem:[%s140 + $0x41] sm:$0x80] %vm262, %v206
        %vm267 = vcmask 146575
        %268 = vst.msk [vmem:[%s140 - $0x7] sm:$0x80] %vm267, %v227
        %269 = vst.msk [vmem:[%s140 + $0x11] sm:$0x80] %vm267, %v231
        %270 = vst.msk [vmem:[%s140 + $0x29] sm:$0x80] %vm267, %v235
        %271 = vst.msk [vmem:[%s140 + $0x41] sm:$0x80] %vm267, %v239
        %vm272 = vcmask 131080
        %273 = vst.msk [vmem:[%s140 + $0x11] sm:$0x1] %vm272, %v159
        %274 = vst.msk [vmem:[%s140 + $0x29] sm:$0x1] %vm272, %v163
        %275 = vst.msk [vmem:[%s140 + $0x41] sm:$0x1] %vm272, %v167
        %276 = vst.msk [vmem:[%s140 + $0x59] sm:$0x1] %vm272, %v171
        %vm277 = vcmask 0
        %278 = vst.msk [vmem:[%s140 + $0x11] sm:$0x1] %vm277, %v192
        %279 = vst.msk [vmem:[%s140 + $0x29] sm:$0x1] %vm277, %v196
        %280 = vst.msk [vmem:[%s140 + $0x41] sm:$0x1] %vm277, %v200
        %281 = vst.msk [vmem:[%s140 + $0x59] sm:$0x1] %vm277, %v204
        %vm282 = vcmask 139400
        %283 = vst.msk [vmem:[%s140 + $0x11] sm:$0x1] %vm282, %v225
        %284 = vst.msk [vmem:[%s140 + $0x29] sm:$0x1] %vm282, %v229
        %285 = vst.msk [vmem:[%s140 + $0x41] sm:$0x1] %vm282, %v233
        %286 = vst.msk [vmem:[%s140 + $0x59] sm:$0x1] %vm282, %v237
        %s287 = smul.u32 4, %s15
        %p288 = scmp.lt.s32.totalorder %s287, 7
        %s289 = scalar_select %p288, %s287, 7
        %s290 = smul.addr %s289, 3
        %s291 = smul.addr %s290, 8
        %s292 = scalar_lea.vmem %s1, %s291
        // Predicated region
        $region29: #{a_call__.1} parent=23 // pred_check
          %p293 = pneg %p59
        $region30: #{a_call__.1} parent=23 // pred_check_branch
          %295 = sbr.rel (%p293) target = $region32
        $region31: #{a_call__.1} parent=23 // pred_region
          %s296 = smul.u32 4, %s15
        $region32: #{a_call__.1} parent=23 // pred_fallthru
          _
      $region24: #{a_call__.1} parent=5 // pred_fallthru
        _
      %p297 = scmp.le.s32.totalorder 2, %s10
      // Predicated region
      $region33: #{a_call__.1} parent=5 // pred_check
        %p298 = pneg %p297
      $region34: #{a_call__.1} parent=5 // pred_check_branch
        %300 = sbr.rel (%p298) target = $region36
      $region35: #{a_call__.1} parent=5 // pred_region
        %s301 = ssub.s32 %s10, 2
        // Predicated region
        $region37: #{a_call__.1} parent=35 // pred_check
          %p302 = pneg %p65
        $region38: #{a_call__.1} parent=35 // pred_check_branch
          %304 = sbr.rel (%p302) target = $region40
        $region39: #{a_call__.1} parent=35 // pred_region
          %s305 = smul.u32 4, %s16
          %p306 = scmp.lt.s32.totalorder %s305, 7
          %s307 = scalar_select %p306, %s305, 7
          %s308 = smul.addr %s307, 3
          %s309 = smul.addr %s308, 8
          %s310 = scalar_lea.vmem %s1, %s309
        $region40: #{a_call__.1} parent=35 // pred_fallthru
          _
      $region36: #{a_call__.1} parent=5 // pred_fallthru
        _
    $region6: #{a_call__.1} parent=1 // loop_footer
      %s14 = sadd.s32 1, %s10
    $region7: #{a_call__.1} parent=1 // loop_footer_branch
      %9 = sbr.rel target = $region3
    $region8: #{a_call__.1} parent=1 // loop_exit
      _
    %311 = vsyncpa [#allocation3], 1
    %s312 = scalar_lea.sflag [#allocation3], 1
    %313 = vsyncpa %s312, 1

</llo_original>
